<compile_context>
chip_gen: v7x
topology: tpu7x:2x2x1
jax: 0.10.0
libtpu: 0.0.40
codegen_flags: <defaults>
</compile_context>

<pallas_src>
import functools

import jax
import jax.numpy as jnp
from jax.experimental import pallas as pl
from jax.experimental.pallas import tpu as pltpu


def _rup(v, m):
    return ((v + m - 1) // m) * m


# ---------------------------------------------------------------------------
# Kernel: fused [one-hot gather of folded per-color H1 table] -> fc2 ->
#         stable log-softmax.
# ---------------------------------------------------------------------------
def _sender2_kernel(ids_ref, h1_tab_ref, w2_ref, b2_ref, o_ref):
    # ids_ref   : (TB, 1)    int32 color ids for this batch tile
    # h1_tab_ref: (NCP, HP)  folded table leaky_relu(leaky_relu(emb)@W1+b1), padded
    # w2_ref    : (HP, VP)   fc2 weight (in x out, padded)
    # b2_ref    : (1, VP)    f32, padded lanes hold -1e9
    # o_ref     : (TB, VP)   f32 log-probabilities (padded lanes are garbage)
    tb = ids_ref.shape[0]
    ncp = h1_tab_ref.shape[0]

    # Fused embedding-side gather: lane-dense one-hot (TB, 128) @ table (MXU).
    ids = ids_ref[...]                                              # (TB, 1)
    onehot = (jax.lax.broadcasted_iota(jnp.int32, (tb, ncp), 1) == ids)
    onehot = onehot.astype(h1_tab_ref.dtype)
    h1 = jnp.dot(onehot, h1_tab_ref[...],
                 preferred_element_type=jnp.float32)                # (TB, HP)

    # fc2 -> logits (padded vocab lanes get -1e9 from b2 padding).
    logits = jnp.dot(h1.astype(w2_ref.dtype), w2_ref[...],
                     preferred_element_type=jnp.float32) + b2_ref[...]

    # Stable log-softmax along the lane (vocab) axis; padded lanes contribute
    # exp(-1e9 - m) == 0 to the sum, so real lanes are exact.
    m = jnp.max(logits, axis=-1, keepdims=True)
    shifted = logits - m
    lse = jnp.log(jnp.sum(jnp.exp(shifted), axis=-1, keepdims=True))
    o_ref[...] = (shifted - lse).astype(o_ref.dtype)


# ---------------------------------------------------------------------------
# One-time parameter preparation (hoisted out of the per-call path).
# ---------------------------------------------------------------------------
def sender2_prepare(emb_table, w1, b1, w2, b2, *, weight_dtype=jnp.bfloat16):
    """Fold emb/fc1 into a per-color table and pad/cast everything once.

    NOTE: w1/w2 are (in, out); transpose torch nn.Linear weights ((out, in))
    before passing them here.
    Returns (h1_tab, w2_p, b2_p, vocab).
    """
    n_colors, _ = emb_table.shape
    hidden = w1.shape[1]
    vocab = w2.shape[1]

    NCP = _rup(n_colors, 128)      # lane-dense one-hot LHS (16 -> 128)
    HP = _rup(hidden, 128)         # 1000 -> 1024
    VP = _rup(vocab, 128)          # 32 -> 128 (lane-dense output)

    # Fold emb -> leaky_relu -> fc1 -> leaky_relu into a per-color table.
    # Tiny (n_colors x 100 x 1000) matmul, done once in f32 by XLA.
    slope = jnp.float32(0.01)
    e = emb_table.astype(jnp.float32)
    h = jnp.where(e > 0, e, slope * e)
    h1 = h @ w1.astype(jnp.float32) + b1.astype(jnp.float32)
    h1 = jnp.where(h1 > 0, h1, slope * h1)                   # (n_colors, hidden)

    h1_tab = jnp.zeros((NCP, HP), weight_dtype).at[:n_colors, :hidden].set(
        h1.astype(weight_dtype))
    w2_p = jnp.zeros((HP, VP), weight_dtype).at[:hidden, :vocab].set(
        w2.astype(weight_dtype))
    # Pad b2 with a large negative so padded logits are exp()->0 in softmax.
    b2_p = jnp.full((1, VP), -1e9, jnp.float32).at[0, :vocab].set(
        b2.astype(jnp.float32))
    return h1_tab, w2_p, b2_p, vocab


# ---------------------------------------------------------------------------
# Forward: one pallas_call, weights VMEM-resident across batch tiles.
# ---------------------------------------------------------------------------
@functools.partial(jax.jit, static_argnames=("vocab", "block_b"))
def sender2_forward(x, h1_tab, w2_p, b2_p, *, vocab, block_b=512):
    """x: (B, F) float array; first column holds integer color ids.

    Returns (B, 1, vocab) float32 log-probabilities.
    """
    B = x.shape[0]
    NCP, HP = h1_tab.shape
    VP = w2_p.shape[1]

    # Batch tile: multiple of 8 (8,128 rule); large enough to amortize the
    # ~0.35us grid-step overhead, but sized so that large B yields >= 2 grid
    # steps so both v7x TensorCores get work ("parallel" batch axis).
    block_b = max(8, (block_b // 8) * 8)
    if B <= 8:
        TB = 8
    else:
        TB = min(_rup(-(-B // 2), 8), block_b)
    BP = _rup(B, TB)

    ids = x[:, 0].astype(jnp.int32)
    ids = jnp.pad(ids, (0, BP - B)).reshape(BP, 1)   # padded rows -> color 0 (discarded)

    out = pl.pallas_call(
        _sender2_kernel,
        out_shape=jax.ShapeDtypeStruct((BP, VP), jnp.float32),
        grid=(BP // TB,),
        in_specs=[
            pl.BlockSpec((TB, 1), lambda i: (i, 0)),       # ids: tiled over batch
            pl.BlockSpec((NCP, HP), lambda i: (0, 0)),     # folded table: resident
            pl.BlockSpec((HP, VP), lambda i: (0, 0)),      # w2: resident
            pl.BlockSpec((1, VP), lambda i: (0, 0)),       # b2: resident
        ],
        out_specs=pl.BlockSpec((TB, VP), lambda i: (i, 0)),
        compiler_params=pltpu.CompilerParams(
            dimension_semantics=("parallel",)),
    )(ids, h1_tab, w2_p, b2_p)

    # Drop batch/vocab padding; restore the singleton dim from x[:, 0:1].
    return out[:B, :vocab].reshape(B, 1, vocab)


def _reference(x, emb_table, w1, b1, w2, b2):
    idx = x[:, 0:1].astype(jnp.int32)
    e = emb_table[idx[:, 0]]
    h = jax.nn.leaky_relu(e, negative_slope=0.01)
    h1 = jax.nn.leaky_relu(h @ w1 + b1, negative_slope=0.01)
    logits = h1 @ w2 + b2
    return jax.nn.log_softmax(logits, axis=-1)[:, None, :]


if __name__ == "__main__":
    n_colors = 16
    vocab_size = 32
    emb_dim = 100
    hidden = 1000
    B = 8

    key = jax.random.PRNGKey(0)
    k0, k1, k2, k3, k4, k5 = jax.random.split(key, 6)

    # Deterministic synthetic parameters. Stored (in, out) — i.e. torch
    # nn.Linear weights transposed.
    emb_table = jax.random.normal(k0, (n_colors, emb_dim), jnp.float32) * 0.5
    w1 = jax.random.normal(k1, (emb_dim, hidden), jnp.float32) * 0.05
    b1 = jax.random.normal(k2, (hidden,), jnp.float32) * 0.01
    w2 = jax.random.normal(k3, (hidden, vocab_size), jnp.float32) * 0.02
    b2 = jax.random.normal(k4, (vocab_size,), jnp.float32) * 0.01

    # Input: (B, 3) float features; first column is the color index.
    color_ids = jax.random.randint(k5, (B, 1), 0, n_colors).astype(jnp.float32)
    other = jax.random.normal(k5, (B, 2), jnp.float32)
    x = jnp.concatenate([color_ids, other], axis=1)

    ref = _reference(x, emb_table, w1, b1, w2, b2)

    # 1) default bf16 weight path (halved weight DMA / VMEM residency).
    params_bf16 = sender2_prepare(emb_table, w1, b1, w2, b2)
    h1t, w2p, b2p, V = params_bf16
    out_bf16 = sender2_forward(x, h1t, w2p, b2p, vocab=V)
    out_bf16 = jax.block_until_ready(out_bf16)
    assert out_bf16.shape == (B, 1, vocab_size)
    assert jnp.allclose(out_bf16, ref, atol=5e-2, rtol=5e-2), "bf16 mismatch"

    # 2) f32 weight path (tolerance covers MXU f32 pass-count differences).
    params_f32 = sender2_prepare(emb_table, w1, b1, w2, b2,
                                 weight_dtype=jnp.float32)
    h1t32, w2p32, b2p32, V32 = params_f32
    out_f32 = sender2_forward(x, h1t32, w2p32, b2p32, vocab=V32)
    out_f32 = jax.block_until_ready(out_f32)
    assert out_f32.shape == (B, 1, vocab_size)
    assert jnp.allclose(out_f32, ref, atol=1e-2, rtol=1e-2), "f32 mismatch"

    # 3) multi-step batch tiling + batch padding (grid > 1; exercises the
    #    >=2-step split used for the v7x two-TensorCore case).
    B2 = 40
    kk = jax.random.PRNGKey(1)
    ids2 = jax.random.randint(kk, (B2, 1), 0, n_colors).astype(jnp.float32)
    x2 = jnp.concatenate([ids2, jnp.zeros((B2, 2), jnp.float32)], axis=1)
    ref2 = _reference(x2, emb_table, w1, b1, w2, b2)

    out2 = sender2_forward(x2, h1t32, w2p32, b2p32, vocab=V32, block_b=16)
    out2 = jax.block_until_ready(out2)
    assert out2.shape == (B2, 1, vocab_size)
    assert jnp.allclose(out2, ref2, atol=1e-2, rtol=1e-2), "tiled f32 mismatch"

    out2b = sender2_forward(x2, h1t, w2p, b2p, vocab=V)   # default block_b, bf16
    out2b = jax.block_until_ready(out2b)
    assert jnp.allclose(out2b, ref2, atol=5e-2, rtol=5e-2), "tiled bf16 mismatch"

    print("KERNEL_OK")
</pallas_src>

<mosaic_0001>
module attributes {stable_mosaic.version = 11 : i64} {
  func.func @_sender2_kernel(%arg0: i32, %arg1: memref<8x1xi32, #tpu.memory_space<vmem>>, %arg2: memref<128x1024xbf16, #tpu.memory_space<vmem>>, %arg3: memref<1024x128xbf16, #tpu.memory_space<vmem>>, %arg4: memref<1x128xf32, #tpu.memory_space<vmem>>, %arg5: memref<8x128xf32, #tpu.memory_space<vmem>>) attributes {dimension_semantics = [#tpu.dimension_semantics<parallel>], iteration_bounds = array<i64: 1>, scalar_prefetch = 0 : i64, scratch_operands = 0 : i64, tpu.core_type = #tpu.core_type<tc>, window_params = [{transform_indices = @transform_0, window_bounds = array<i64: 8, 1>}, {pipeline_mode = #tpu.pipeline_mode<synchronous>, transform_indices = @transform_1, window_bounds = array<i64: 128, 1024>}, {pipeline_mode = #tpu.pipeline_mode<synchronous>, transform_indices = @transform_2, window_bounds = array<i64: 1024, 128>}, {pipeline_mode = #tpu.pipeline_mode<synchronous>, transform_indices = @transform_3, window_bounds = array<i64: 1, 128>}, {transform_indices = @transform_4, window_bounds = array<i64: 8, 128>}]} {
    %c0 = arith.constant 0 : index
    %c0_0 = arith.constant 0 : index
    %0 = vector.load %arg1[%c0, %c0_0] : memref<8x1xi32, #tpu.memory_space<vmem>>, vector<8x1xi32>
    %1 = tpu.iota {dimensions = array<i32: 1>} : vector<8x128xi32>
    %2 = vector.broadcast %0 : vector<8x1xi32> to vector<8x128xi32>
    %3 = arith.cmpi eq, %1, %2 : vector<8x128xi32>
    %4 = arith.extui %3 : vector<8x128xi1> to vector<8x128xi32>
    %5 = arith.sitofp %4 : vector<8x128xi32> to vector<8x128xf32>
    %6 = arith.truncf %5 : vector<8x128xf32> to vector<8x128xbf16>
    %c0_1 = arith.constant 0 : index
    %c0_2 = arith.constant 0 : index
    %7 = vector.load %arg2[%c0_1, %c0_2] : memref<128x1024xbf16, #tpu.memory_space<vmem>>, vector<128x1024xbf16>
    %cst = arith.constant dense<0.000000e+00> : vector<8x1024xf32>
    %8 = tpu.matmul %6, %7, %cst {dimension_numbers = #tpu.dot_dimension_numbers<[1], [0], [0], [1], [0, 0, 1, 1], [], []>} : vector<8x128xbf16>, vector<128x1024xbf16>, vector<8x1024xf32> -> vector<8x1024xf32>
    %9 = arith.truncf %8 : vector<8x1024xf32> to vector<8x1024xbf16>
    %c0_3 = arith.constant 0 : index
    %c0_4 = arith.constant 0 : index
    %10 = vector.load %arg3[%c0_3, %c0_4] : memref<1024x128xbf16, #tpu.memory_space<vmem>>, vector<1024x128xbf16>
    %cst_5 = arith.constant dense<0.000000e+00> : vector<8x128xf32>
    %11 = tpu.matmul %9, %10, %cst_5 {dimension_numbers = #tpu.dot_dimension_numbers<[1], [0], [0], [1], [0, 0, 1, 1], [], []>} : vector<8x1024xbf16>, vector<1024x128xbf16>, vector<8x128xf32> -> vector<8x128xf32>
    %c0_6 = arith.constant 0 : index
    %c0_7 = arith.constant 0 : index
    %12 = vector.load %arg4[%c0_6, %c0_7] : memref<1x128xf32, #tpu.memory_space<vmem>>, vector<1x128xf32>
    %13 = vector.broadcast %12 : vector<1x128xf32> to vector<8x128xf32>
    %14 = arith.addf %11, %13 : vector<8x128xf32>
    %cst_8 = arith.constant dense<0xFF800000> : vector<8xf32>
    %15 = vector.multi_reduction <maximumf>, %14, %cst_8 [1] : vector<8x128xf32> to vector<8xf32>
    %16 = vector.shape_cast %15 : vector<8xf32> to vector<8x1xf32>
    %17 = vector.broadcast %16 : vector<8x1xf32> to vector<8x128xf32>
    %18 = arith.subf %14, %17 : vector<8x128xf32>
    %19 = math.exp %18 : vector<8x128xf32>
    %cst_9 = arith.constant dense<0.000000e+00> : vector<8xf32>
    %20 = vector.multi_reduction <add>, %19, %cst_9 [1] : vector<8x128xf32> to vector<8xf32>
    %21 = vector.shape_cast %20 : vector<8xf32> to vector<8x1xf32>
    %22 = math.log %21 : vector<8x1xf32>
    %23 = vector.broadcast %22 : vector<8x1xf32> to vector<8x128xf32>
    %24 = arith.subf %18, %23 : vector<8x128xf32>
    %c0_10 = arith.constant 0 : index
    %c0_11 = arith.constant 0 : index
    %25 = vector.load %arg5[%c0_10, %c0_11] : memref<8x128xf32, #tpu.memory_space<vmem>>, vector<8x128xf32>
    tpu.vector_store %arg5[%c0_10, %c0_11], %24 {strides = array<i32>} : memref<8x128xf32, #tpu.memory_space<vmem>>, vector<8x128xf32>,
    return
  }
  func.func @transform_0(%arg0: i32) -> (i32, i32) {
    %c0_i32 = arith.constant 0 : i32
    %c0_i32_0 = arith.constant 0 : i32
    return %arg0, %c0_i32 : i32, i32
  }
  func.func @transform_1(%arg0: i32) -> (i32, i32) {
    %c0_i32 = arith.constant 0 : i32
    %c0_i32_0 = arith.constant 0 : i32
    %c0_i32_1 = arith.constant 0 : i32
    return %c0_i32, %c0_i32_0 : i32, i32
  }
  func.func @transform_2(%arg0: i32) -> (i32, i32) {
    %c0_i32 = arith.constant 0 : i32
    %c0_i32_0 = arith.constant 0 : i32
    %c0_i32_1 = arith.constant 0 : i32
    return %c0_i32, %c0_i32_0 : i32, i32
  }
  func.func @transform_3(%arg0: i32) -> (i32, i32) {
    %c0_i32 = arith.constant 0 : i32
    %c0_i32_0 = arith.constant 0 : i32
    %c0_i32_1 = arith.constant 0 : i32
    return %c0_i32, %c0_i32_0 : i32, i32
  }
  func.func @transform_4(%arg0: i32) -> (i32, i32) {
    %c0_i32 = arith.constant 0 : i32
    %c0_i32_0 = arith.constant 0 : i32
    return %arg0, %c0_i32 : i32, i32
  }
}

</mosaic_0001>

<llo_original>
// kernel: sender2_forward.1
$region0: #{sender2_forward.1}
  #allocation0 [shape = 'u32[]', space=smem, size = 0x4, offset = 0x4, fixed_abs, tag = 'smem constant byte address 0x4 - core index']
  #allocation1 [shape = 'u32[144,128]{1,0:T(1,128)}', space=vmem, size = 0x12000, scoped, tag = 'internal scratch']
  %s0 = inlined_call_operand.vmem [shape: s32[8,1], index: 0, kind: input, shape index: {}]
  %s1 = inlined_call_operand.hbm [shape: bf16[128,1024], index: 1, kind: input, shape index: {}]
  %s2 = inlined_call_operand.hbm [shape: bf16[1024,128], index: 2, kind: input, shape index: {}]
  %s3 = inlined_call_operand.vmem [shape: f32[1,128], index: 3, kind: input, shape index: {}]
  %s4 = inlined_call_operand.hbm [shape: f32[8,128], index: 4, kind: output, shape index: {}]
  %s5 = sld [smem:[#allocation0]]
  $region34: #{sender2_forward.1} parent=0
    _
  %s7 = ssub.s32 1, %s5
  %s8 = scalar_select 0, %s7, %s5
  $region1: #{sender2_forward.1} parent=0
    #allocation2 [shape = 'u8[262144]{0}', space=vmem, size = 0x40000, scoped, tag = 'input window, operand 1, single buffered']
    #allocation3 [shape = 's32[1]{0}', space=sflag, size = 0x4, scoped, tag = 'scoped memory for sender2_forward.1']
    #allocation4 [shape = 's32[1]{0}', space=sflag, size = 0x4, scoped, tag = 'scoped memory for sender2_forward.1']
    #allocation5 [shape = 'u8[262144]{0}', space=vmem, size = 0x40000, scoped, tag = 'input window, operand 2, single buffered']
    #allocation6 [shape = 's32[1]{0}', space=sflag, size = 0x4, scoped, tag = 'scoped memory for sender2_forward.1']
    #allocation7 [shape = 'u8[4096]{0}', space=vmem, size = 0x1000, scoped, tag = 'output window, operand 0, single buffered']
    %9 = vsyncpa [#allocation3], 0
    %10 = vsyncpa [#allocation6], 0
    %11 = vsyncpa [#allocation4], 0
    // Predicated region
    $region2: #{sender2_forward.1} parent=1 // pred_check
      _
    $region3: #{sender2_forward.1} parent=1 // pred_check_branch
      %13 = sbr.rel (0) target = $region5
    $region4: #{sender2_forward.1} parent=1 // pred_region
      _
    $region5: #{sender2_forward.1} parent=1 // pred_fallthru
      _
    // Predicated region
    $region6: #{sender2_forward.1} parent=1 // pred_check
      _
    $region7: #{sender2_forward.1} parent=1 // pred_check_branch
      %15 = sbr.rel (0) target = $region9
    $region8: #{sender2_forward.1} parent=1 // pred_region
      %s17 = ssub.s32 8192, 8192
      %18 = vsyncadd [#allocation3], %s17
      %s19 = sshll.u32 [#allocation2], 4
      %s20 = int_to_ptr.vmem [resolvable:$true] %s19
      %25 = dma.hbm_to_vmem [thread:$0]  %s1, 8192, %s20, [#allocation3], 512, 512, 32
    $region9: #{sender2_forward.1} parent=1 // pred_fallthru
      _
    // Predicated region
    $region10: #{sender2_forward.1} parent=1 // pred_check
      _
    $region11: #{sender2_forward.1} parent=1 // pred_check_branch
      %27 = sbr.rel (0) target = $region13
    $region12: #{sender2_forward.1} parent=1 // pred_region
      %s29 = ssub.s32 8192, 8192
      %30 = vsyncadd [#allocation6], %s29
      %s31 = sshll.u32 [#allocation5], 4
      %s32 = int_to_ptr.vmem [resolvable:$true] %s31
      %37 = dma.hbm_to_vmem [thread:$0]  %s2, 8192, %s32, [#allocation6], 64, 64, 4
    $region13: #{sender2_forward.1} parent=1 // pred_fallthru
      _
    // Predicated region
    $region14: #{sender2_forward.1} parent=1 // pred_check
      _
    $region15: #{sender2_forward.1} parent=1 // pred_check_branch
      %39 = sbr.rel (0) target = $region17
    $region16: #{sender2_forward.1} parent=1 // pred_region
      _
    $region17: #{sender2_forward.1} parent=1 // pred_fallthru
      _
    // Predicated region
    $region18: #{sender2_forward.1} parent=1 // pred_check
      _
    $region19: #{sender2_forward.1} parent=1 // pred_check_branch
      %41 = sbr.rel (0) target = $region21
    $region20: #{sender2_forward.1} parent=1 // pred_region
      %42 = dma.done [#allocation3], 8192
    $region21: #{sender2_forward.1} parent=1 // pred_fallthru
      _
    // Predicated region
    $region22: #{sender2_forward.1} parent=1 // pred_check
      _
    $region23: #{sender2_forward.1} parent=1 // pred_check_branch
      %44 = sbr.rel (0) target = $region25
    $region24: #{sender2_forward.1} parent=1 // pred_region
      %45 = dma.done [#allocation6], 8192
    $region25: #{sender2_forward.1} parent=1 // pred_fallthru
      _
    %v47 = vld [vmem:[%s0] sm:$0xff]
    %v48 = vlaneseq
    %v49 = vand.u32 %v48, 127
    %50 = vset.pattern.permute.xlu0 0
    %51 = vperm.xlu0 %50, %v47
    %v52 = vpop.permute.xlu0 %51
    %vm53 = vcmp.eq.s32.totalorder %v49, %v52
    %v54 = vsel %vm53, 1, 0
    %v55 = vcvt.s32.f32 %v54
    %v56 = vpack.c.bf16 %v55, %v55
    %v57 = vld [vmem:[#allocation2] sm:$0xff]
    %v58 = vld [vmem:[#allocation2 + $0x8] sm:$0xff]
    %v59 = vld [vmem:[#allocation2 + $0x10] sm:$0xff]
    %v60 = vld [vmem:[#allocation2 + $0x18] sm:$0xff]
    %v61 = vld [vmem:[#allocation2 + $0x20] sm:$0xff]
    %v62 = vld [vmem:[#allocation2 + $0x28] sm:$0xff]
    %v63 = vld [vmem:[#allocation2 + $0x30] sm:$0xff]
    %v64 = vld [vmem:[#allocation2 + $0x38] sm:$0xff]
    %v65 = vld [vmem:[#allocation2 + $0x40] sm:$0xff]
    %v66 = vld [vmem:[#allocation2 + $0x48] sm:$0xff]
    %v67 = vld [vmem:[#allocation2 + $0x50] sm:$0xff]
    %v68 = vld [vmem:[#allocation2 + $0x58] sm:$0xff]
    %v69 = vld [vmem:[#allocation2 + $0x60] sm:$0xff]
    %v70 = vld [vmem:[#allocation2 + $0x68] sm:$0xff]
    %v71 = vld [vmem:[#allocation2 + $0x70] sm:$0xff]
    %v72 = vld [vmem:[#allocation2 + $0x78] sm:$0xff]
    %v73 = vld [vmem:[#allocation2 + $0x80] sm:$0xff]
    %v74 = vld [vmem:[#allocation2 + $0x88] sm:$0xff]
    %v75 = vld [vmem:[#allocation2 + $0x90] sm:$0xff]
    %v76 = vld [vmem:[#allocation2 + $0x98] sm:$0xff]
    %v77 = vld [vmem:[#allocation2 + $0xa0] sm:$0xff]
    %v78 = vld [vmem:[#allocation2 + $0xa8] sm:$0xff]
    %v79 = vld [vmem:[#allocation2 + $0xb0] sm:$0xff]
    %v80 = vld [vmem:[#allocation2 + $0xb8] sm:$0xff]
    %v81 = vld [vmem:[#allocation2 + $0xc0] sm:$0xff]
    %v82 = vld [vmem:[#allocation2 + $0xc8] sm:$0xff]
    %v83 = vld [vmem:[#allocation2 + $0xd0] sm:$0xff]
    %v84 = vld [vmem:[#allocation2 + $0xd8] sm:$0xff]
    %v85 = vld [vmem:[#allocation2 + $0xe0] sm:$0xff]
    %v86 = vld [vmem:[#allocation2 + $0xe8] sm:$0xff]
    %v87 = vld [vmem:[#allocation2 + $0xf0] sm:$0xff]
    %v88 = vld [vmem:[#allocation2 + $0xf8] sm:$0xff]
    %v89 = vld [vmem:[#allocation2 + $0x100] sm:$0xff]
    %v90 = vld [vmem:[#allocation2 + $0x108] sm:$0xff]
    %v91 = vld [vmem:[#allocation2 + $0x110] sm:$0xff]
    %v92 = vld [vmem:[#allocation2 + $0x118] sm:$0xff]
    %v93 = vld [vmem:[#allocation2 + $0x120] sm:$0xff]
    %v94 = vld [vmem:[#allocation2 + $0x128] sm:$0xff]
    %v95 = vld [vmem:[#allocation2 + $0x130] sm:$0xff]
    %v96 = vld [vmem:[#allocation2 + $0x138] sm:$0xff]
    %v97 = vld [vmem:[#allocation2 + $0x140] sm:$0xff]
    %v98 = vld [vmem:[#allocation2 + $0x148] sm:$0xff]
    %v99 = vld [vmem:[#allocation2 + $0x150] sm:$0xff]
    %v100 = vld [vmem:[#allocation2 + $0x158] sm:$0xff]
    %v101 = vld [vmem:[#allocation2 + $0x160] sm:$0xff]
    %v102 = vld [vmem:[#allocation2 + $0x168] sm:$0xff]
    %v103 = vld [vmem:[#allocation2 + $0x170] sm:$0xff]
    %v104 = vld [vmem:[#allocation2 + $0x178] sm:$0xff]
    %v105 = vld [vmem:[#allocation2 + $0x180] sm:$0xff]
    %v106 = vld [vmem:[#allocation2 + $0x188] sm:$0xff]
    %v107 = vld [vmem:[#allocation2 + $0x190] sm:$0xff]
    %v108 = vld [vmem:[#allocation2 + $0x198] sm:$0xff]
    %v109 = vld [vmem:[#allocation2 + $0x1a0] sm:$0xff]
    %v110 = vld [vmem:[#allocation2 + $0x1a8] sm:$0xff]
    %v111 = vld [vmem:[#allocation2 + $0x1b0] sm:$0xff]
    %v112 = vld [vmem:[#allocation2 + $0x1b8] sm:$0xff]
    %v113 = vld [vmem:[#allocation2 + $0x1c0] sm:$0xff]
    %v114 = vld [vmem:[#allocation2 + $0x1c8] sm:$0xff]
    %v115 = vld [vmem:[#allocation2 + $0x1d0] sm:$0xff]
    %v116 = vld [vmem:[#allocation2 + $0x1d8] sm:$0xff]
    %v117 = vld [vmem:[#allocation2 + $0x1e0] sm:$0xff]
    %v118 = vld [vmem:[#allocation2 + $0x1e8] sm:$0xff]
    %v119 = vld [vmem:[#allocation2 + $0x1f0] sm:$0xff]
    %v120 = vld [vmem:[#allocation2 + $0x1f8] sm:$0xff]
    %v185 = vunpack.c.l.b16 %v57
    %v186 = vunpack.c.h.b16 %v57
    %v187 = vunpack.c.l.b16 %v58
    %v188 = vunpack.c.h.b16 %v58
    %v189 = vunpack.c.l.b16 %v59
    %v190 = vunpack.c.h.b16 %v59
    %v191 = vunpack.c.l.b16 %v60
    %v192 = vunpack.c.h.b16 %v60
    %v193 = vunpack.c.l.b16 %v61
    %v194 = vunpack.c.h.b16 %v61
    %v195 = vunpack.c.l.b16 %v62
    %v196 = vunpack.c.h.b16 %v62
    %v197 = vunpack.c.l.b16 %v63
    %v198 = vunpack.c.h.b16 %v63
    %v199 = vunpack.c.l.b16 %v64
    %v200 = vunpack.c.h.b16 %v64
    %v201 = vunpack.c.l.b16 %v65
    %v202 = vunpack.c.h.b16 %v65
    %v203 = vunpack.c.l.b16 %v66
    %v204 = vunpack.c.h.b16 %v66
    %v205 = vunpack.c.l.b16 %v67
    %v206 = vunpack.c.h.b16 %v67
    %v207 = vunpack.c.l.b16 %v68
    %v208 = vunpack.c.h.b16 %v68
    %v209 = vunpack.c.l.b16 %v69
    %v210 = vunpack.c.h.b16 %v69
    %v211 = vunpack.c.l.b16 %v70
    %v212 = vunpack.c.h.b16 %v70
    %v213 = vunpack.c.l.b16 %v71
    %v214 = vunpack.c.h.b16 %v71
    %v215 = vunpack.c.l.b16 %v72
    %v216 = vunpack.c.h.b16 %v72
    %v217 = vunpack.c.l.b16 %v73
    %v218 = vunpack.c.h.b16 %v73
    %v219 = vunpack.c.l.b16 %v74
    %v220 = vunpack.c.h.b16 %v74
    %v221 = vunpack.c.l.b16 %v75
    %v222 = vunpack.c.h.b16 %v75
    %v223 = vunpack.c.l.b16 %v76
    %v224 = vunpack.c.h.b16 %v76
    %v225 = vunpack.c.l.b16 %v77
    %v226 = vunpack.c.h.b16 %v77
    %v227 = vunpack.c.l.b16 %v78
    %v228 = vunpack.c.h.b16 %v78
    %v229 = vunpack.c.l.b16 %v79
    %v230 = vunpack.c.h.b16 %v79
    %v231 = vunpack.c.l.b16 %v80
    %v232 = vunpack.c.h.b16 %v80
    %v233 = vunpack.c.l.b16 %v81
    %v234 = vunpack.c.h.b16 %v81
    %v235 = vunpack.c.l.b16 %v82
    %v236 = vunpack.c.h.b16 %v82
    %v237 = vunpack.c.l.b16 %v83
    %v238 = vunpack.c.h.b16 %v83
    %v239 = vunpack.c.l.b16 %v84
    %v240 = vunpack.c.h.b16 %v84
    %v241 = vunpack.c.l.b16 %v85
    %v242 = vunpack.c.h.b16 %v85
    %v243 = vunpack.c.l.b16 %v86
    %v244 = vunpack.c.h.b16 %v86
    %v245 = vunpack.c.l.b16 %v87
    %v246 = vunpack.c.h.b16 %v87
    %v247 = vunpack.c.l.b16 %v88
    %v248 = vunpack.c.h.b16 %v88
    %v249 = vunpack.c.l.b16 %v89
    %v250 = vunpack.c.h.b16 %v89
    %v251 = vunpack.c.l.b16 %v90
    %v252 = vunpack.c.h.b16 %v90
    %v253 = vunpack.c.l.b16 %v91
    %v254 = vunpack.c.h.b16 %v91
    %v255 = vunpack.c.l.b16 %v92
    %v256 = vunpack.c.h.b16 %v92
    %v257 = vunpack.c.l.b16 %v93
    %v258 = vunpack.c.h.b16 %v93
    %v259 = vunpack.c.l.b16 %v94
    %v260 = vunpack.c.h.b16 %v94
    %v261 = vunpack.c.l.b16 %v95
    %v262 = vunpack.c.h.b16 %v95
    %v263 = vunpack.c.l.b16 %v96
    %v264 = vunpack.c.h.b16 %v96
    %v265 = vunpack.c.l.b16 %v97
    %v266 = vunpack.c.h.b16 %v97
    %v267 = vunpack.c.l.b16 %v98
    %v268 = vunpack.c.h.b16 %v98
    %v269 = vunpack.c.l.b16 %v99
    %v270 = vunpack.c.h.b16 %v99
    %v271 = vunpack.c.l.b16 %v100
    %v272 = vunpack.c.h.b16 %v100
    %v273 = vunpack.c.l.b16 %v101
    %v274 = vunpack.c.h.b16 %v101
    %v275 = vunpack.c.l.b16 %v102
    %v276 = vunpack.c.h.b16 %v102
    %v277 = vunpack.c.l.b16 %v103
    %v278 = vunpack.c.h.b16 %v103
    %v279 = vunpack.c.l.b16 %v104
    %v280 = vunpack.c.h.b16 %v104
    %v281 = vunpack.c.l.b16 %v105
    %v282 = vunpack.c.h.b16 %v105
    %v283 = vunpack.c.l.b16 %v106
    %v284 = vunpack.c.h.b16 %v106
    %v285 = vunpack.c.l.b16 %v107
    %v286 = vunpack.c.h.b16 %v107
    %v287 = vunpack.c.l.b16 %v108
    %v288 = vunpack.c.h.b16 %v108
    %v289 = vunpack.c.l.b16 %v109
    %v290 = vunpack.c.h.b16 %v109
    %v291 = vunpack.c.l.b16 %v110
    %v292 = vunpack.c.h.b16 %v110
    %v293 = vunpack.c.l.b16 %v111
    %v294 = vunpack.c.h.b16 %v111
    %v295 = vunpack.c.l.b16 %v112
    %v296 = vunpack.c.h.b16 %v112
    %v297 = vunpack.c.l.b16 %v113
    %v298 = vunpack.c.h.b16 %v113
    %v299 = vunpack.c.l.b16 %v114
    %v300 = vunpack.c.h.b16 %v114
    %v301 = vunpack.c.l.b16 %v115
    %v302 = vunpack.c.h.b16 %v115
    %v303 = vunpack.c.l.b16 %v116
    %v304 = vunpack.c.h.b16 %v116
    %v305 = vunpack.c.l.b16 %v117
    %v306 = vunpack.c.h.b16 %v117
    %v307 = vunpack.c.l.b16 %v118
    %v308 = vunpack.c.h.b16 %v118
    %v309 = vunpack.c.l.b16 %v119
    %v310 = vunpack.c.h.b16 %v119
    %v311 = vunpack.c.l.b16 %v120
    %v312 = vunpack.c.h.b16 %v120
    %v313 = vpack.c.b16 %v193, %v185
    %v314 = vpack.c.b16 %v194, %v186
    %v315 = vpack.c.b16 %v195, %v187
    %v316 = vpack.c.b16 %v196, %v188
    %v317 = vpack.c.b16 %v197, %v189
    %v318 = vpack.c.b16 %v198, %v190
    %v319 = vpack.c.b16 %v199, %v191
    %v320 = vpack.c.b16 %v200, %v192
    %v321 = vpack.c.b16 %v209, %v201
    %v322 = vpack.c.b16 %v210, %v202
    %v323 = vpack.c.b16 %v211, %v203
    %v324 = vpack.c.b16 %v212, %v204
    %v325 = vpack.c.b16 %v213, %v205
    %v326 = vpack.c.b16 %v214, %v206
    %v327 = vpack.c.b16 %v215, %v207
    %v328 = vpack.c.b16 %v216, %v208
    %v329 = vpack.c.b16 %v225, %v217
    %v330 = vpack.c.b16 %v226, %v218
    %v331 = vpack.c.b16 %v227, %v219
    %v332 = vpack.c.b16 %v228, %v220
    %v333 = vpack.c.b16 %v229, %v221
    %v334 = vpack.c.b16 %v230, %v222
    %v335 = vpack.c.b16 %v231, %v223
    %v336 = vpack.c.b16 %v232, %v224
    %v337 = vpack.c.b16 %v241, %v233
    %v338 = vpack.c.b16 %v242, %v234
    %v339 = vpack.c.b16 %v243, %v235
    %v340 = vpack.c.b16 %v244, %v236
    %v341 = vpack.c.b16 %v245, %v237
    %v342 = vpack.c.b16 %v246, %v238
    %v343 = vpack.c.b16 %v247, %v239
    %v344 = vpack.c.b16 %v248, %v240
    %v345 = vpack.c.b16 %v257, %v249
    %v346 = vpack.c.b16 %v258, %v250
    %v347 = vpack.c.b16 %v259, %v251
    %v348 = vpack.c.b16 %v260, %v252
    %v349 = vpack.c.b16 %v261, %v253
    %v350 = vpack.c.b16 %v262, %v254
    %v351 = vpack.c.b16 %v263, %v255
    %v352 = vpack.c.b16 %v264, %v256
    %v353 = vpack.c.b16 %v273, %v265
    %v354 = vpack.c.b16 %v274, %v266
    %v355 = vpack.c.b16 %v275, %v267
    %v356 = vpack.c.b16 %v276, %v268
    %v357 = vpack.c.b16 %v277, %v269
    %v358 = vpack.c.b16 %v278, %v270
    %v359 = vpack.c.b16 %v279, %v271
    %v360 = vpack.c.b16 %v280, %v272
    %v361 = vpack.c.b16 %v289, %v281
    %v362 = vpack.c.b16 %v290, %v282
    %v363 = vpack.c.b16 %v291, %v283
    %v364 = vpack.c.b16 %v292, %v284
    %v365 = vpack.c.b16 %v293, %v285
    %v366 = vpack.c.b16 %v294, %v286
    %v367 = vpack.c.b16 %v295, %v287
    %v368 = vpack.c.b16 %v296, %v288
    %v369 = vpack.c.b16 %v305, %v297
    %v370 = vpack.c.b16 %v306, %v298
    %v371 = vpack.c.b16 %v307, %v299
    %v372 = vpack.c.b16 %v308, %v300
    %v373 = vpack.c.b16 %v309, %v301
    %v374 = vpack.c.b16 %v310, %v302
    %v375 = vpack.c.b16 %v311, %v303
    %v376 = vpack.c.b16 %v312, %v304
    %441 = vmatprep.subr.bf16.mxu0 %v314
    %442 = vmatpush1.bf16.msra.mxu0 %v313
    %443 = vmatprep.subr.bf16.mxu0 %v322
    %444 = vmatpush1.bf16.msra.mxu0 %v321
    %445 = vmatprep.subr.bf16.mxu0 %v330
    %446 = vmatpush1.bf16.msra.mxu0 %v329
    %447 = vmatprep.subr.bf16.mxu0 %v338
    %448 = vmatpush1.bf16.msra.mxu0 %v337
    %449 = vmatprep.subr.bf16.mxu0 %v346
    %450 = vmatpush1.bf16.msra.mxu0 %v345
    %451 = vmatprep.subr.bf16.mxu0 %v354
    %452 = vmatpush1.bf16.msra.mxu0 %v353
    %453 = vmatprep.subr.bf16.mxu0 %v362
    %454 = vmatpush1.bf16.msra.mxu0 %v361
    %455 = vmatprep.subr.bf16.mxu0 %v370
    %456 = vmatpush1.bf16.msra.mxu0 %v369
    %457 = vmatprep.subr.bf16.mxu0 0
    %458 = vmatpush1.bf16.msra.mxu0 0
    %459 = vmatprep.subr.bf16.mxu0 0
    %460 = vmatpush1.bf16.msra.mxu0 0
    %461 = vmatprep.subr.bf16.mxu0 0
    %462 = vmatpush1.bf16.msra.mxu0 0
    %463 = vmatprep.subr.bf16.mxu0 0
    %464 = vmatpush1.bf16.msra.mxu0 0
    %465 = vmatprep.subr.bf16.mxu0 0
    %466 = vmatpush1.bf16.msra.mxu0 0
    %467 = vmatprep.subr.bf16.mxu0 0
    %468 = vmatpush1.bf16.msra.mxu0 0
    %469 = vmatprep.subr.bf16.mxu0 0
    %470 = vmatpush1.bf16.msra.mxu0 0
    %471 = vmatprep.subr.bf16.mxu0 0
    %472 = vmatpush1.bf16.msra.mxu0 0
    %473 = vmatprep.mubr.bf16.mxu0 0
    %474 = vmatmul.mubr.bf16.gmra.mrb[0].mxu0 %v56
    %v475 = vpop.f32.mrb[0].mxu0
    %v476 = vadd.f32 0.0, %v475
    %v477 = vpop.f32.mrb[0].mxu0
    %v478 = vadd.f32 0.0, %v477
    %v479 = vpop.f32.mrb[0].mxu0
    %v480 = vpop.f32.mrb[0].mxu0
    %481 = vdwg.mxu0
    %482 = vmatprep.subr.bf16.mxu0 %v316
    %483 = vmatpush1.bf16.msra.mxu0 %v315
    %484 = vmatprep.subr.bf16.mxu0 %v324
    %485 = vmatpush1.bf16.msra.mxu0 %v323
    %486 = vmatprep.subr.bf16.mxu0 %v332
    %487 = vmatpush1.bf16.msra.mxu0 %v331
    %488 = vmatprep.subr.bf16.mxu0 %v340
    %489 = vmatpush1.bf16.msra.mxu0 %v339
    %490 = vmatprep.subr.bf16.mxu0 %v348
    %491 = vmatpush1.bf16.msra.mxu0 %v347
    %492 = vmatprep.subr.bf16.mxu0 %v356
    %493 = vmatpush1.bf16.msra.mxu0 %v355
    %494 = vmatprep.subr.bf16.mxu0 %v364
    %495 = vmatpush1.bf16.msra.mxu0 %v363
    %496 = vmatprep.subr.bf16.mxu0 %v372
    %497 = vmatpush1.bf16.msra.mxu0 %v371
    %498 = vmatprep.subr.bf16.mxu0 0
    %499 = vmatpush1.bf16.msra.mxu0 0
    %500 = vmatprep.subr.bf16.mxu0 0
    %501 = vmatpush1.bf16.msra.mxu0 0
    %502 = vmatprep.subr.bf16.mxu0 0
    %503 = vmatpush1.bf16.msra.mxu0 0
    %504 = vmatprep.subr.bf16.mxu0 0
    %505 = vmatpush1.bf16.msra.mxu0 0
    %506 = vmatprep.subr.bf16.mxu0 0
    %507 = vmatpush1.bf16.msra.mxu0 0
    %508 = vmatprep.subr.bf16.mxu0 0
    %509 = vmatpush1.bf16.msra.mxu0 0
    %510 = vmatprep.subr.bf16.mxu0 0
    %511 = vmatpush1.bf16.msra.mxu0 0
    %512 = vmatprep.subr.bf16.mxu0 0
    %513 = vmatpush1.bf16.msra.mxu0 0
    %514 = vmatprep.mubr.bf16.mxu0 0
    %515 = vmatmul.mubr.bf16.gmra.mrb[0].mxu0 %v56
    %v516 = vpop.f32.mrb[0].mxu0
    %v517 = vadd.f32 0.0, %v516
    %v518 = vpop.f32.mrb[0].mxu0
    %v519 = vadd.f32 0.0, %v518
    %v520 = vpop.f32.mrb[0].mxu0
    %v521 = vpop.f32.mrb[0].mxu0
    %522 = vdwg.mxu0
    %523 = vmatprep.subr.bf16.mxu0 %v318
    %524 = vmatpush1.bf16.msra.mxu0 %v317
    %525 = vmatprep.subr.bf16.mxu0 %v326
    %526 = vmatpush1.bf16.msra.mxu0 %v325
    %527 = vmatprep.subr.bf16.mxu0 %v334
    %528 = vmatpush1.bf16.msra.mxu0 %v333
    %529 = vmatprep.subr.bf16.mxu0 %v342
    %530 = vmatpush1.bf16.msra.mxu0 %v341
    %531 = vmatprep.subr.bf16.mxu0 %v350
    %532 = vmatpush1.bf16.msra.mxu0 %v349
    %533 = vmatprep.subr.bf16.mxu0 %v358
    %534 = vmatpush1.bf16.msra.mxu0 %v357
    %535 = vmatprep.subr.bf16.mxu0 %v366
    %536 = vmatpush1.bf16.msra.mxu0 %v365
    %537 = vmatprep.subr.bf16.mxu0 %v374
    %538 = vmatpush1.bf16.msra.mxu0 %v373
    %539 = vmatprep.subr.bf16.mxu0 0
    %540 = vmatpush1.bf16.msra.mxu0 0
    %541 = vmatprep.subr.bf16.mxu0 0
    %542 = vmatpush1.bf16.msra.mxu0 0
    %543 = vmatprep.subr.bf16.mxu0 0
    %544 = vmatpush1.bf16.msra.mxu0 0
    %545 = vmatprep.subr.bf16.mxu0 0
    %546 = vmatpush1.bf16.msra.mxu0 0
    %547 = vmatprep.subr.bf16.mxu0 0
    %548 = vmatpush1.bf16.msra.mxu0 0
    %549 = vmatprep.subr.bf16.mxu0 0
    %550 = vmatpush1.bf16.msra.mxu0 0
    %551 = vmatprep.subr.bf16.mxu0 0
    %552 = vmatpush1.bf16.msra.mxu0 0
    %553 = vmatprep.subr.bf16.mxu0 0
    %554 = vmatpush1.bf16.msra.mxu0 0
    %555 = vmatprep.mubr.bf16.mxu0 0
    %556 = vmatmul.mubr.bf16.gmra.mrb[0].mxu0 %v56
    %v557 = vpop.f32.mrb[0].mxu0
    %v558 = vadd.f32 0.0, %v557
    %v559 = vpop.f32.mrb[0].mxu0
    %v560 = vadd.f32 0.0, %v559
    %v561 = vpop.f32.mrb[0].mxu0
    %v562 = vpop.f32.mrb[0].mxu0
    %563 = vdwg.mxu0
    %564 = vmatprep.subr.bf16.mxu0 %v320
    %565 = vmatpush1.bf16.msra.mxu0 %v319
    %566 = vmatprep.subr.bf16.mxu0 %v328
    %567 = vmatpush1.bf16.msra.mxu0 %v327
    %568 = vmatprep.subr.bf16.mxu0 %v336
    %569 = vmatpush1.bf16.msra.mxu0 %v335
    %570 = vmatprep.subr.bf16.mxu0 %v344
    %571 = vmatpush1.bf16.msra.mxu0 %v343
    %572 = vmatprep.subr.bf16.mxu0 %v352
    %573 = vmatpush1.bf16.msra.mxu0 %v351
    %574 = vmatprep.subr.bf16.mxu0 %v360
    %575 = vmatpush1.bf16.msra.mxu0 %v359
    %576 = vmatprep.subr.bf16.mxu0 %v368
    %577 = vmatpush1.bf16.msra.mxu0 %v367
    %578 = vmatprep.subr.bf16.mxu0 %v376
    %579 = vmatpush1.bf16.msra.mxu0 %v375
    %580 = vmatprep.subr.bf16.mxu0 0
    %581 = vmatpush1.bf16.msra.mxu0 0
    %582 = vmatprep.subr.bf16.mxu0 0
    %583 = vmatpush1.bf16.msra.mxu0 0
    %584 = vmatprep.subr.bf16.mxu0 0
    %585 = vmatpush1.bf16.msra.mxu0 0
    %586 = vmatprep.subr.bf16.mxu0 0
    %587 = vmatpush1.bf16.msra.mxu0 0
    %588 = vmatprep.subr.bf16.mxu0 0
    %589 = vmatpush1.bf16.msra.mxu0 0
    %590 = vmatprep.subr.bf16.mxu0 0
    %591 = vmatpush1.bf16.msra.mxu0 0
    %592 = vmatprep.subr.bf16.mxu0 0
    %593 = vmatpush1.bf16.msra.mxu0 0
    %594 = vmatprep.subr.bf16.mxu0 0
    %595 = vmatpush1.bf16.msra.mxu0 0
    %596 = vmatprep.mubr.bf16.mxu0 0
    %597 = vmatmul.mubr.bf16.gmra.mrb[0].mxu0 %v56
    %v598 = vpop.f32.mrb[0].mxu0
    %v599 = vadd.f32 0.0, %v598
    %v600 = vpop.f32.mrb[0].mxu0
    %v601 = vadd.f32 0.0, %v600
    %v602 = vpop.f32.mrb[0].mxu0
    %v603 = vpop.f32.mrb[0].mxu0
    %604 = vdwg.mxu0
    %v605 = vpack.c.bf16 %v476, %v476
    %v606 = vpack.c.bf16 %v478, %v478
    %v607 = vpack.c.bf16 %v517, %v517
    %v608 = vpack.c.bf16 %v519, %v519
    %v609 = vpack.c.bf16 %v558, %v558
    %v610 = vpack.c.bf16 %v560, %v560
    %v611 = vpack.c.bf16 %v599, %v599
    %v612 = vpack.c.bf16 %v601, %v601
    %v613 = vld [vmem:[#allocation5] sm:$0xf]
    %v614 = vld [vmem:[#allocation5 + $0x4] sm:$0xf]
    %v615 = vld [vmem:[#allocation5 + $0x8] sm:$0xf]
    %v616 = vld [vmem:[#allocation5 + $0xc] sm:$0xf]
    %v617 = vld [vmem:[#allocation5 + $0x10] sm:$0xf]
    %v618 = vld [vmem:[#allocation5 + $0x14] sm:$0xf]
    %v619 = vld [vmem:[#allocation5 + $0x18] sm:$0xf]
    %v620 = vld [vmem:[#allocation5 + $0x1c] sm:$0xf]
    %v621 = vld [vmem:[#allocation5 + $0x20] sm:$0xf]
    %v622 = vld [vmem:[#allocation5 + $0x24] sm:$0xf]
    %v623 = vld [vmem:[#allocation5 + $0x28] sm:$0xf]
    %v624 = vld [vmem:[#allocation5 + $0x2c] sm:$0xf]
    %v625 = vld [vmem:[#allocation5 + $0x30] sm:$0xf]
    %v626 = vld [vmem:[#allocation5 + $0x34] sm:$0xf]
    %v627 = vld [vmem:[#allocation5 + $0x38] sm:$0xf]
    %v628 = vld [vmem:[#allocation5 + $0x3c] sm:$0xf]
    %v629 = vld [vmem:[#allocation5 + $0x40] sm:$0xf]
    %v630 = vld [vmem:[#allocation5 + $0x44] sm:$0xf]
    %v631 = vld [vmem:[#allocation5 + $0x48] sm:$0xf]
    %v632 = vld [vmem:[#allocation5 + $0x4c] sm:$0xf]
    %v633 = vld [vmem:[#allocation5 + $0x50] sm:$0xf]
    %v634 = vld [vmem:[#allocation5 + $0x54] sm:$0xf]
    %v635 = vld [vmem:[#allocation5 + $0x58] sm:$0xf]
    %v636 = vld [vmem:[#allocation5 + $0x5c] sm:$0xf]
    %v637 = vld [vmem:[#allocation5 + $0x60] sm:$0xf]
    %v638 = vld [vmem:[#allocation5 + $0x64] sm:$0xf]
    %v639 = vld [vmem:[#allocation5 + $0x68] sm:$0xf]
    %v640 = vld [vmem:[#allocation5 + $0x6c] sm:$0xf]
    %v641 = vld [vmem:[#allocation5 + $0x70] sm:$0xf]
    %v642 = vld [vmem:[#allocation5 + $0x74] sm:$0xf]
    %v643 = vld [vmem:[#allocation5 + $0x78] sm:$0xf]
    %v644 = vld [vmem:[#allocation5 + $0x7c] sm:$0xf]
    %v645 = vld [vmem:[#allocation5 + $0x80] sm:$0xf]
    %v646 = vld [vmem:[#allocation5 + $0x84] sm:$0xf]
    %v647 = vld [vmem:[#allocation5 + $0x88] sm:$0xf]
    %v648 = vld [vmem:[#allocation5 + $0x8c] sm:$0xf]
    %v649 = vld [vmem:[#allocation5 + $0x90] sm:$0xf]
    %v650 = vld [vmem:[#allocation5 + $0x94] sm:$0xf]
    %v651 = vld [vmem:[#allocation5 + $0x98] sm:$0xf]
    %v652 = vld [vmem:[#allocation5 + $0x9c] sm:$0xf]
    %v653 = vld [vmem:[#allocation5 + $0xa0] sm:$0xf]
    %v654 = vld [vmem:[#allocation5 + $0xa4] sm:$0xf]
    %v655 = vld [vmem:[#allocation5 + $0xa8] sm:$0xf]
    %v656 = vld [vmem:[#allocation5 + $0xac] sm:$0xf]
    %v657 = vld [vmem:[#allocation5 + $0xb0] sm:$0xf]
    %v658 = vld [vmem:[#allocation5 + $0xb4] sm:$0xf]
    %v659 = vld [vmem:[#allocation5 + $0xb8] sm:$0xf]
    %v660 = vld [vmem:[#allocation5 + $0xbc] sm:$0xf]
    %v661 = vld [vmem:[#allocation5 + $0xc0] sm:$0xf]
    %v662 = vld [vmem:[#allocation5 + $0xc4] sm:$0xf]
    %v663 = vld [vmem:[#allocation5 + $0xc8] sm:$0xf]
    %v664 = vld [vmem:[#allocation5 + $0xcc] sm:$0xf]
    %v665 = vld [vmem:[#allocation5 + $0xd0] sm:$0xf]
    %v666 = vld [vmem:[#allocation5 + $0xd4] sm:$0xf]
    %v667 = vld [vmem:[#allocation5 + $0xd8] sm:$0xf]
    %v668 = vld [vmem:[#allocation5 + $0xdc] sm:$0xf]
    %v669 = vld [vmem:[#allocation5 + $0xe0] sm:$0xf]
    %v670 = vld [vmem:[#allocation5 + $0xe4] sm:$0xf]
    %v671 = vld [vmem:[#allocation5 + $0xe8] sm:$0xf]
    %v672 = vld [vmem:[#allocation5 + $0xec] sm:$0xf]
    %v673 = vld [vmem:[#allocation5 + $0xf0] sm:$0xf]
    %v674 = vld [vmem:[#allocation5 + $0xf4] sm:$0xf]
    %v675 = vld [vmem:[#allocation5 + $0xf8] sm:$0xf]
    %v676 = vld [vmem:[#allocation5 + $0xfc] sm:$0xf]
    %v677 = vld [vmem:[#allocation5 + $0x100] sm:$0xf]
    %v678 = vld [vmem:[#allocation5 + $0x104] sm:$0xf]
    %v679 = vld [vmem:[#allocation5 + $0x108] sm:$0xf]
    %v680 = vld [vmem:[#allocation5 + $0x10c] sm:$0xf]
    %v681 = vld [vmem:[#allocation5 + $0x110] sm:$0xf]
    %v682 = vld [vmem:[#allocation5 + $0x114] sm:$0xf]
    %v683 = vld [vmem:[#allocation5 + $0x118] sm:$0xf]
    %v684 = vld [vmem:[#allocation5 + $0x11c] sm:$0xf]
    %v685 = vld [vmem:[#allocation5 + $0x120] sm:$0xf]
    %v686 = vld [vmem:[#allocation5 + $0x124] sm:$0xf]
    %v687 = vld [vmem:[#allocation5 + $0x128] sm:$0xf]
    %v688 = vld [vmem:[#allocation5 + $0x12c] sm:$0xf]
    %v689 = vld [vmem:[#allocation5 + $0x130] sm:$0xf]
    %v690 = vld [vmem:[#allocation5 + $0x134] sm:$0xf]
    %v691 = vld [vmem:[#allocation5 + $0x138] sm:$0xf]
    %v692 = vld [vmem:[#allocation5 + $0x13c] sm:$0xf]
    %v693 = vld [vmem:[#allocation5 + $0x140] sm:$0xf]
    %v694 = vld [vmem:[#allocation5 + $0x144] sm:$0xf]
    %v695 = vld [vmem:[#allocation5 + $0x148] sm:$0xf]
    %v696 = vld [vmem:[#allocation5 + $0x14c] sm:$0xf]
    %v697 = vld [vmem:[#allocation5 + $0x150] sm:$0xf]
    %v698 = vld [vmem:[#allocation5 + $0x154] sm:$0xf]
    %v699 = vld [vmem:[#allocation5 + $0x158] sm:$0xf]
    %v700 = vld [vmem:[#allocation5 + $0x15c] sm:$0xf]
    %v701 = vld [vmem:[#allocation5 + $0x160] sm:$0xf]
    %v702 = vld [vmem:[#allocation5 + $0x164] sm:$0xf]
    %v703 = vld [vmem:[#allocation5 + $0x168] sm:$0xf]
    %v704 = vld [vmem:[#allocation5 + $0x16c] sm:$0xf]
    %v705 = vld [vmem:[#allocation5 + $0x170] sm:$0xf]
    %v706 = vld [vmem:[#allocation5 + $0x174] sm:$0xf]
    %v707 = vld [vmem:[#allocation5 + $0x178] sm:$0xf]
    %v708 = vld [vmem:[#allocation5 + $0x17c] sm:$0xf]
    %v709 = vld [vmem:[#allocation5 + $0x180] sm:$0xf]
    %v710 = vld [vmem:[#allocation5 + $0x184] sm:$0xf]
    %v711 = vld [vmem:[#allocation5 + $0x188] sm:$0xf]
    %v712 = vld [vmem:[#allocation5 + $0x18c] sm:$0xf]
    %v713 = vld [vmem:[#allocation5 + $0x190] sm:$0xf]
    %v714 = vld [vmem:[#allocation5 + $0x194] sm:$0xf]
    %v715 = vld [vmem:[#allocation5 + $0x198] sm:$0xf]
    %v716 = vld [vmem:[#allocation5 + $0x19c] sm:$0xf]
    %v717 = vld [vmem:[#allocation5 + $0x1a0] sm:$0xf]
    %v718 = vld [vmem:[#allocation5 + $0x1a4] sm:$0xf]
    %v719 = vld [vmem:[#allocation5 + $0x1a8] sm:$0xf]
    %v720 = vld [vmem:[#allocation5 + $0x1ac] sm:$0xf]
    %v721 = vld [vmem:[#allocation5 + $0x1b0] sm:$0xf]
    %v722 = vld [vmem:[#allocation5 + $0x1b4] sm:$0xf]
    %v723 = vld [vmem:[#allocation5 + $0x1b8] sm:$0xf]
    %v724 = vld [vmem:[#allocation5 + $0x1bc] sm:$0xf]
    %v725 = vld [vmem:[#allocation5 + $0x1c0] sm:$0xf]
    %v726 = vld [vmem:[#allocation5 + $0x1c4] sm:$0xf]
    %v727 = vld [vmem:[#allocation5 + $0x1c8] sm:$0xf]
    %v728 = vld [vmem:[#allocation5 + $0x1cc] sm:$0xf]
    %v729 = vld [vmem:[#allocation5 + $0x1d0] sm:$0xf]
    %v730 = vld [vmem:[#allocation5 + $0x1d4] sm:$0xf]
    %v731 = vld [vmem:[#allocation5 + $0x1d8] sm:$0xf]
    %v732 = vld [vmem:[#allocation5 + $0x1dc] sm:$0xf]
    %v733 = vld [vmem:[#allocation5 + $0x1e0] sm:$0xf]
    %v734 = vld [vmem:[#allocation5 + $0x1e4] sm:$0xf]
    %v735 = vld [vmem:[#allocation5 + $0x1e8] sm:$0xf]
    %v736 = vld [vmem:[#allocation5 + $0x1ec] sm:$0xf]
    %v737 = vld [vmem:[#allocation5 + $0x1f0] sm:$0xf]
    %v738 = vld [vmem:[#allocation5 + $0x1f4] sm:$0xf]
    %v739 = vld [vmem:[#allocation5 + $0x1f8] sm:$0xf]
    %v740 = vld [vmem:[#allocation5 + $0x1fc] sm:$0xf]
    %v741 = vld [vmem:[%s3] sm:$0x1]
    %v743 = vlaneseq
    %v744 = vshrl.u32 %v743, 7
    %v745 = vsub.s32 0, %v744
    %v746 = vrot.slane %v741, %v745
    %v876 = vunpack.c.l.b16 %v613
    %v877 = vunpack.c.l.b16 %v614
    %v878 = vunpack.c.l.b16 %v615
    %v879 = vunpack.c.l.b16 %v616
    %v880 = vunpack.c.l.b16 %v617
    %v881 = vunpack.c.l.b16 %v618
    %v882 = vunpack.c.l.b16 %v619
    %v883 = vunpack.c.l.b16 %v620
    %v884 = vunpack.c.l.b16 %v621
    %v885 = vunpack.c.l.b16 %v622
    %v886 = vunpack.c.l.b16 %v623
    %v887 = vunpack.c.l.b16 %v624
    %v888 = vunpack.c.l.b16 %v625
    %v889 = vunpack.c.l.b16 %v626
    %v890 = vunpack.c.l.b16 %v627
    %v891 = vunpack.c.l.b16 %v628
    %v892 = vunpack.c.l.b16 %v629
    %v893 = vunpack.c.l.b16 %v630
    %v894 = vunpack.c.l.b16 %v631
    %v895 = vunpack.c.l.b16 %v632
    %v896 = vunpack.c.l.b16 %v633
    %v897 = vunpack.c.l.b16 %v634
    %v898 = vunpack.c.l.b16 %v635
    %v899 = vunpack.c.l.b16 %v636
    %v900 = vunpack.c.l.b16 %v637
    %v901 = vunpack.c.l.b16 %v638
    %v902 = vunpack.c.l.b16 %v639
    %v903 = vunpack.c.l.b16 %v640
    %v904 = vunpack.c.l.b16 %v641
    %v905 = vunpack.c.l.b16 %v642
    %v906 = vunpack.c.l.b16 %v643
    %v907 = vunpack.c.l.b16 %v644
    %v908 = vunpack.c.l.b16 %v645
    %v909 = vunpack.c.l.b16 %v646
    %v910 = vunpack.c.l.b16 %v647
    %v911 = vunpack.c.l.b16 %v648
    %v912 = vunpack.c.l.b16 %v649
    %v913 = vunpack.c.l.b16 %v650
    %v914 = vunpack.c.l.b16 %v651
    %v915 = vunpack.c.l.b16 %v652
    %v916 = vunpack.c.l.b16 %v653
    %v917 = vunpack.c.l.b16 %v654
    %v918 = vunpack.c.l.b16 %v655
    %v919 = vunpack.c.l.b16 %v656
    %v920 = vunpack.c.l.b16 %v657
    %v921 = vunpack.c.l.b16 %v658
    %v922 = vunpack.c.l.b16 %v659
    %v923 = vunpack.c.l.b16 %v660
    %v924 = vunpack.c.l.b16 %v661
    %v925 = vunpack.c.l.b16 %v662
    %v926 = vunpack.c.l.b16 %v663
    %v927 = vunpack.c.l.b16 %v664
    %v928 = vunpack.c.l.b16 %v665
    %v929 = vunpack.c.l.b16 %v666
    %v930 = vunpack.c.l.b16 %v667
    %v931 = vunpack.c.l.b16 %v668
    %v932 = vunpack.c.l.b16 %v669
    %v933 = vunpack.c.l.b16 %v670
    %v934 = vunpack.c.l.b16 %v671
    %v935 = vunpack.c.l.b16 %v672
    %v936 = vunpack.c.l.b16 %v673
    %v937 = vunpack.c.l.b16 %v674
    %v938 = vunpack.c.l.b16 %v675
    %v939 = vunpack.c.l.b16 %v676
    %v940 = vunpack.c.l.b16 %v677
    %v941 = vunpack.c.l.b16 %v678
    %v942 = vunpack.c.l.b16 %v679
    %v943 = vunpack.c.l.b16 %v680
    %v944 = vunpack.c.l.b16 %v681
    %v945 = vunpack.c.l.b16 %v682
    %v946 = vunpack.c.l.b16 %v683
    %v947 = vunpack.c.l.b16 %v684
    %v948 = vunpack.c.l.b16 %v685
    %v949 = vunpack.c.l.b16 %v686
    %v950 = vunpack.c.l.b16 %v687
    %v951 = vunpack.c.l.b16 %v688
    %v952 = vunpack.c.l.b16 %v689
    %v953 = vunpack.c.l.b16 %v690
    %v954 = vunpack.c.l.b16 %v691
    %v955 = vunpack.c.l.b16 %v692
    %v956 = vunpack.c.l.b16 %v693
    %v957 = vunpack.c.l.b16 %v694
    %v958 = vunpack.c.l.b16 %v695
    %v959 = vunpack.c.l.b16 %v696
    %v960 = vunpack.c.l.b16 %v697
    %v961 = vunpack.c.l.b16 %v698
    %v962 = vunpack.c.l.b16 %v699
    %v963 = vunpack.c.l.b16 %v700
    %v964 = vunpack.c.l.b16 %v701
    %v965 = vunpack.c.l.b16 %v702
    %v966 = vunpack.c.l.b16 %v703
    %v967 = vunpack.c.l.b16 %v704
    %v968 = vunpack.c.l.b16 %v705
    %v969 = vunpack.c.l.b16 %v706
    %v970 = vunpack.c.l.b16 %v707
    %v971 = vunpack.c.l.b16 %v708
    %v972 = vunpack.c.l.b16 %v709
    %v973 = vunpack.c.l.b16 %v710
    %v974 = vunpack.c.l.b16 %v711
    %v975 = vunpack.c.l.b16 %v712
    %v976 = vunpack.c.l.b16 %v713
    %v977 = vunpack.c.l.b16 %v714
    %v978 = vunpack.c.l.b16 %v715
    %v979 = vunpack.c.l.b16 %v716
    %v980 = vunpack.c.l.b16 %v717
    %v981 = vunpack.c.l.b16 %v718
    %v982 = vunpack.c.l.b16 %v719
    %v983 = vunpack.c.l.b16 %v720
    %v984 = vunpack.c.l.b16 %v721
    %v985 = vunpack.c.l.b16 %v722
    %v986 = vunpack.c.l.b16 %v723
    %v987 = vunpack.c.l.b16 %v724
    %v988 = vunpack.c.l.b16 %v725
    %v989 = vunpack.c.l.b16 %v726
    %v990 = vunpack.c.l.b16 %v727
    %v991 = vunpack.c.l.b16 %v728
    %v992 = vunpack.c.l.b16 %v729
    %v993 = vunpack.c.l.b16 %v730
    %v994 = vunpack.c.l.b16 %v731
    %v995 = vunpack.c.l.b16 %v732
    %v996 = vunpack.c.l.b16 %v733
    %v997 = vunpack.c.l.b16 %v734
    %v998 = vunpack.c.l.b16 %v735
    %v999 = vunpack.c.l.b16 %v736
    %v1000 = vunpack.c.l.b16 %v737
    %v1001 = vunpack.c.l.b16 %v738
    %v1002 = vunpack.c.l.b16 %v739
    %v1003 = vunpack.c.l.b16 %v740
    %v1004 = vpack.c.b16 %v877, %v876
    %v1005 = vpack.c.b16 %v879, %v878
    %v1006 = vpack.c.b16 %v881, %v880
    %v1007 = vpack.c.b16 %v883, %v882
    %v1008 = vpack.c.b16 %v885, %v884
    %v1009 = vpack.c.b16 %v887, %v886
    %v1010 = vpack.c.b16 %v889, %v888
    %v1011 = vpack.c.b16 %v891, %v890
    %v1012 = vpack.c.b16 %v893, %v892
    %v1013 = vpack.c.b16 %v895, %v894
    %v1014 = vpack.c.b16 %v897, %v896
    %v1015 = vpack.c.b16 %v899, %v898
    %v1016 = vpack.c.b16 %v901, %v900
    %v1017 = vpack.c.b16 %v903, %v902
    %v1018 = vpack.c.b16 %v905, %v904
    %v1019 = vpack.c.b16 %v907, %v906
    %v1020 = vpack.c.b16 %v909, %v908
    %v1021 = vpack.c.b16 %v911, %v910
    %v1022 = vpack.c.b16 %v913, %v912
    %v1023 = vpack.c.b16 %v915, %v914
    %v1024 = vpack.c.b16 %v917, %v916
    %v1025 = vpack.c.b16 %v919, %v918
    %v1026 = vpack.c.b16 %v921, %v920
    %v1027 = vpack.c.b16 %v923, %v922
    %v1028 = vpack.c.b16 %v925, %v924
    %v1029 = vpack.c.b16 %v927, %v926
    %v1030 = vpack.c.b16 %v929, %v928
    %v1031 = vpack.c.b16 %v931, %v930
    %v1032 = vpack.c.b16 %v933, %v932
    %v1033 = vpack.c.b16 %v935, %v934
    %v1034 = vpack.c.b16 %v937, %v936
    %v1035 = vpack.c.b16 %v939, %v938
    %v1036 = vpack.c.b16 %v941, %v940
    %v1037 = vpack.c.b16 %v943, %v942
    %v1038 = vpack.c.b16 %v945, %v944
    %v1039 = vpack.c.b16 %v947, %v946
    %v1040 = vpack.c.b16 %v949, %v948
    %v1041 = vpack.c.b16 %v951, %v950
    %v1042 = vpack.c.b16 %v953, %v952
    %v1043 = vpack.c.b16 %v955, %v954
    %v1044 = vpack.c.b16 %v957, %v956
    %v1045 = vpack.c.b16 %v959, %v958
    %v1046 = vpack.c.b16 %v961, %v960
    %v1047 = vpack.c.b16 %v963, %v962
    %v1048 = vpack.c.b16 %v965, %v964
    %v1049 = vpack.c.b16 %v967, %v966
    %v1050 = vpack.c.b16 %v969, %v968
    %v1051 = vpack.c.b16 %v971, %v970
    %v1052 = vpack.c.b16 %v973, %v972
    %v1053 = vpack.c.b16 %v975, %v974
    %v1054 = vpack.c.b16 %v977, %v976
    %v1055 = vpack.c.b16 %v979, %v978
    %v1056 = vpack.c.b16 %v981, %v980
    %v1057 = vpack.c.b16 %v983, %v982
    %v1058 = vpack.c.b16 %v985, %v984
    %v1059 = vpack.c.b16 %v987, %v986
    %v1060 = vpack.c.b16 %v989, %v988
    %v1061 = vpack.c.b16 %v991, %v990
    %v1062 = vpack.c.b16 %v993, %v992
    %v1063 = vpack.c.b16 %v995, %v994
    %v1064 = vpack.c.b16 %v997, %v996
    %v1065 = vpack.c.b16 %v999, %v998
    %v1066 = vpack.c.b16 %v1001, %v1000
    %v1067 = vpack.c.b16 %v1003, %v1002
    %1132 = vmatprep.subr.bf16.mxu0 0
    %1133 = vmatpush1.bf16.msra.mxu0 %v1004
    %1134 = vmatprep.subr.bf16.mxu0 0
    %1135 = vmatpush1.bf16.msra.mxu0 %v1005
    %1136 = vmatprep.subr.bf16.mxu0 0
    %1137 = vmatpush1.bf16.msra.mxu0 %v1006
    %1138 = vmatprep.subr.bf16.mxu0 0
    %1139 = vmatpush1.bf16.msra.mxu0 %v1007
    %1140 = vmatprep.subr.bf16.mxu0 0
    %1141 = vmatpush1.bf16.msra.mxu0 %v1008
    %1142 = vmatprep.subr.bf16.mxu0 0
    %1143 = vmatpush1.bf16.msra.mxu0 %v1009
    %1144 = vmatprep.subr.bf16.mxu0 0
    %1145 = vmatpush1.bf16.msra.mxu0 %v1010
    %1146 = vmatprep.subr.bf16.mxu0 0
    %1147 = vmatpush1.bf16.msra.mxu0 %v1011
    %1148 = vmatprep.subr.bf16.mxu0 0
    %1149 = vmatpush1.bf16.msra.mxu0 %v1012
    %1150 = vmatprep.subr.bf16.mxu0 0
    %1151 = vmatpush1.bf16.msra.mxu0 %v1013
    %1152 = vmatprep.subr.bf16.mxu0 0
    %1153 = vmatpush1.bf16.msra.mxu0 %v1014
    %1154 = vmatprep.subr.bf16.mxu0 0
    %1155 = vmatpush1.bf16.msra.mxu0 %v1015
    %1156 = vmatprep.subr.bf16.mxu0 0
    %1157 = vmatpush1.bf16.msra.mxu0 %v1016
    %1158 = vmatprep.subr.bf16.mxu0 0
    %1159 = vmatpush1.bf16.msra.mxu0 %v1017
    %1160 = vmatprep.subr.bf16.mxu0 0
    %1161 = vmatpush1.bf16.msra.mxu0 %v1018
    %1162 = vmatprep.subr.bf16.mxu0 0
    %1163 = vmatpush1.bf16.msra.mxu0 %v1019
    %1164 = vmatprep.mubr.bf16.mxu0 %v606
    %1165 = vmatmul.mubr.bf16.gmra.mrb[0].mxu0 %v605
    %v1166 = vpop.f32.mrb[0].mxu0
    %v1167 = vadd.f32 %v746, %v1166
    %v1168 = vpop.f32.mrb[0].mxu0
    %v1169 = vpop.f32.mrb[0].mxu0
    %v1170 = vpop.f32.mrb[0].mxu0
    %1171 = vdwg.mxu0
    %1172 = vmatprep.subr.bf16.mxu0 0
    %1173 = vmatpush1.bf16.msra.mxu0 %v1020
    %1174 = vmatprep.subr.bf16.mxu0 0
    %1175 = vmatpush1.bf16.msra.mxu0 %v1021
    %1176 = vmatprep.subr.bf16.mxu0 0
    %1177 = vmatpush1.bf16.msra.mxu0 %v1022
    %1178 = vmatprep.subr.bf16.mxu0 0
    %1179 = vmatpush1.bf16.msra.mxu0 %v1023
    %1180 = vmatprep.subr.bf16.mxu0 0
    %1181 = vmatpush1.bf16.msra.mxu0 %v1024
    %1182 = vmatprep.subr.bf16.mxu0 0
    %1183 = vmatpush1.bf16.msra.mxu0 %v1025
    %1184 = vmatprep.subr.bf16.mxu0 0
    %1185 = vmatpush1.bf16.msra.mxu0 %v1026
    %1186 = vmatprep.subr.bf16.mxu0 0
    %1187 = vmatpush1.bf16.msra.mxu0 %v1027
    %1188 = vmatprep.subr.bf16.mxu0 0
    %1189 = vmatpush1.bf16.msra.mxu0 %v1028
    %1190 = vmatprep.subr.bf16.mxu0 0
    %1191 = vmatpush1.bf16.msra.mxu0 %v1029
    %1192 = vmatprep.subr.bf16.mxu0 0
    %1193 = vmatpush1.bf16.msra.mxu0 %v1030
    %1194 = vmatprep.subr.bf16.mxu0 0
    %1195 = vmatpush1.bf16.msra.mxu0 %v1031
    %1196 = vmatprep.subr.bf16.mxu0 0
    %1197 = vmatpush1.bf16.msra.mxu0 %v1032
    %1198 = vmatprep.subr.bf16.mxu0 0
    %1199 = vmatpush1.bf16.msra.mxu0 %v1033
    %1200 = vmatprep.subr.bf16.mxu0 0
    %1201 = vmatpush1.bf16.msra.mxu0 %v1034
    %1202 = vmatprep.subr.bf16.mxu0 0
    %1203 = vmatpush1.bf16.msra.mxu0 %v1035
    %1204 = vmatprep.mubr.bf16.mxu0 %v608
    %1205 = vmatmul.mubr.bf16.gmra.mrb[0].mxu0 %v607
    %v1206 = vpop.f32.mrb[0].mxu0
    %v1207 = vadd.f32 %v1167, %v1206
    %v1208 = vpop.f32.mrb[0].mxu0
    %v1209 = vpop.f32.mrb[0].mxu0
    %v1210 = vpop.f32.mrb[0].mxu0
    %1211 = vdwg.mxu0
    %1212 = vmatprep.subr.bf16.mxu0 0
    %1213 = vmatpush1.bf16.msra.mxu0 %v1036
    %1214 = vmatprep.subr.bf16.mxu0 0
    %1215 = vmatpush1.bf16.msra.mxu0 %v1037
    %1216 = vmatprep.subr.bf16.mxu0 0
    %1217 = vmatpush1.bf16.msra.mxu0 %v1038
    %1218 = vmatprep.subr.bf16.mxu0 0
    %1219 = vmatpush1.bf16.msra.mxu0 %v1039
    %1220 = vmatprep.subr.bf16.mxu0 0
    %1221 = vmatpush1.bf16.msra.mxu0 %v1040
    %1222 = vmatprep.subr.bf16.mxu0 0
    %1223 = vmatpush1.bf16.msra.mxu0 %v1041
    %1224 = vmatprep.subr.bf16.mxu0 0
    %1225 = vmatpush1.bf16.msra.mxu0 %v1042
    %1226 = vmatprep.subr.bf16.mxu0 0
    %1227 = vmatpush1.bf16.msra.mxu0 %v1043
    %1228 = vmatprep.subr.bf16.mxu0 0
    %1229 = vmatpush1.bf16.msra.mxu0 %v1044
    %1230 = vmatprep.subr.bf16.mxu0 0
    %1231 = vmatpush1.bf16.msra.mxu0 %v1045
    %1232 = vmatprep.subr.bf16.mxu0 0
    %1233 = vmatpush1.bf16.msra.mxu0 %v1046
    %1234 = vmatprep.subr.bf16.mxu0 0
    %1235 = vmatpush1.bf16.msra.mxu0 %v1047
    %1236 = vmatprep.subr.bf16.mxu0 0
    %1237 = vmatpush1.bf16.msra.mxu0 %v1048
    %1238 = vmatprep.subr.bf16.mxu0 0
    %1239 = vmatpush1.bf16.msra.mxu0 %v1049
    %1240 = vmatprep.subr.bf16.mxu0 0
    %1241 = vmatpush1.bf16.msra.mxu0 %v1050
    %1242 = vmatprep.subr.bf16.mxu0 0
    %1243 = vmatpush1.bf16.msra.mxu0 %v1051
    %1244 = vmatprep.mubr.bf16.mxu0 %v610
    %1245 = vmatmul.mubr.bf16.gmra.mrb[0].mxu0 %v609
    %v1246 = vpop.f32.mrb[0].mxu0
    %v1247 = vadd.f32 %v1207, %v1246
    %v1248 = vpop.f32.mrb[0].mxu0
    %v1249 = vpop.f32.mrb[0].mxu0
    %v1250 = vpop.f32.mrb[0].mxu0
    %1251 = vdwg.mxu0
    %1252 = vmatprep.subr.bf16.mxu0 0
    %1253 = vmatpush1.bf16.msra.mxu0 %v1052
    %1254 = vmatprep.subr.bf16.mxu0 0
    %1255 = vmatpush1.bf16.msra.mxu0 %v1053
    %1256 = vmatprep.subr.bf16.mxu0 0
    %1257 = vmatpush1.bf16.msra.mxu0 %v1054
    %1258 = vmatprep.subr.bf16.mxu0 0
    %1259 = vmatpush1.bf16.msra.mxu0 %v1055
    %1260 = vmatprep.subr.bf16.mxu0 0
    %1261 = vmatpush1.bf16.msra.mxu0 %v1056
    %1262 = vmatprep.subr.bf16.mxu0 0
    %1263 = vmatpush1.bf16.msra.mxu0 %v1057
    %1264 = vmatprep.subr.bf16.mxu0 0
    %1265 = vmatpush1.bf16.msra.mxu0 %v1058
    %1266 = vmatprep.subr.bf16.mxu0 0
    %1267 = vmatpush1.bf16.msra.mxu0 %v1059
    %1268 = vmatprep.subr.bf16.mxu0 0
    %1269 = vmatpush1.bf16.msra.mxu0 %v1060
    %1270 = vmatprep.subr.bf16.mxu0 0
    %1271 = vmatpush1.bf16.msra.mxu0 %v1061
    %1272 = vmatprep.subr.bf16.mxu0 0
    %1273 = vmatpush1.bf16.msra.mxu0 %v1062
    %1274 = vmatprep.subr.bf16.mxu0 0
    %1275 = vmatpush1.bf16.msra.mxu0 %v1063
    %1276 = vmatprep.subr.bf16.mxu0 0
    %1277 = vmatpush1.bf16.msra.mxu0 %v1064
    %1278 = vmatprep.subr.bf16.mxu0 0
    %1279 = vmatpush1.bf16.msra.mxu0 %v1065
    %1280 = vmatprep.subr.bf16.mxu0 0
    %1281 = vmatpush1.bf16.msra.mxu0 %v1066
    %1282 = vmatprep.subr.bf16.mxu0 0
    %1283 = vmatpush1.bf16.msra.mxu0 %v1067
    %1284 = vmatprep.mubr.bf16.mxu0 %v612
    %1285 = vmatmul.mubr.bf16.gmra.mrb[0].mxu0 %v611
    %v1286 = vpop.f32.mrb[0].mxu0
    %v1287 = vadd.f32 %v1247, %v1286
    %v1288 = vpop.f32.mrb[0].mxu0
    %v1289 = vpop.f32.mrb[0].mxu0
    %v1290 = vpop.f32.mrb[0].mxu0
    %1291 = vdwg.mxu0
    %1292 = vmax.xlane.f32.xlu0 %v1287
    %v1293 = vpop.xlane.xlu0 %1292
    %v1294 = vsub.f32 %v1287, %v1293
    %v1295 = vmul.f32 %v1294, 1.442695
    %v1296 = vpow.pop %v1295
    %1297 = vadd.xlane.f32.xlu0 %v1296
    %v1298 = vpop.xlane.xlu0 %1297
    %v1299 = vlog2.pop %v1298
    %v1300 = vmul.f32 %v1299, 0.6931472
    %v1301 = vsub.f32 %v1294, %v1300
    %1302 = vst [vmem:[#allocation7] sm:$0xff] %v1301
    // Predicated region
    $region26: #{sender2_forward.1} parent=1 // pred_check
      _
    $region27: #{sender2_forward.1} parent=1 // pred_check_branch
      %1304 = sbr.rel (0) target = $region29
    $region28: #{sender2_forward.1} parent=1 // pred_region
      %s1306 = ssub.s32 128, 128
      %1307 = vsyncadd [#allocation4], %s1306
      %s1309 = sshll.u32 [#allocation7], 4
      %s1310 = int_to_ptr.vmem [resolvable:$true] %s1309
      %1312 = dma.vmem_to_hbm [thread:$0]  %s1310, 128, %s4, [#allocation4]
    $region29: #{sender2_forward.1} parent=1 // pred_fallthru
      _
    // Predicated region
    $region30: #{sender2_forward.1} parent=1 // pred_check
      _
    $region31: #{sender2_forward.1} parent=1 // pred_check_branch
      %1314 = sbr.rel (0) target = $region33
    $region32: #{sender2_forward.1} parent=1 // pred_region
      %1315 = dma.done [#allocation4], 128
    $region33: #{sender2_forward.1} parent=1 // pred_fallthru
      _
    %1316 = vsyncpa [#allocation3], 1
    %1317 = vsyncpa [#allocation6], 1
    %1318 = vsyncpa [#allocation4], 1

</llo_original>
